<compile_context>
chip_gen: v6e
topology: v6e:2x2x1
jax: 0.10.0
libtpu: 0.0.40
codegen_flags: <defaults>
</compile_context>

<pallas_src>
import functools
import math

import jax
import jax.numpy as jnp
from jax import lax
from jax.experimental import pallas as pl
from jax.experimental.pallas import tpu as pltpu

_LANE = 128
_SUBLANE = 8


def _round_up(x, m):
    return (x + m - 1) // m * m


# ----------------------------------------------------------------------------
# Kernel: one (batch_block, time_block) grid step; recurrence inside.
# ----------------------------------------------------------------------------
def _rnn_seq_kernel(x_ref, h0_ref, wx_ref, wh_ref, b_ref,
                    out_ref, hfin_ref, h_scr,
                    *, hidden_size, hidden_pad, t_block, seq_len, mask_time):
    # x_ref:    (T_BLK, B_BLK, I_pad)   inputs for this time block (bf16)
    # h0_ref:   (B_BLK, H_pad)          initial hidden, zero padded (f32)
    # wx_ref:   (I_pad, N_pad)          fused input weights  [i2h | i2o] (bf16)
    # wh_ref:   (H_pad, N_pad)          fused hidden weights [i2h | i2o] (bf16)
    # b_ref:    (1, N_pad)              fused bias (f32)
    # out_ref:  (T_BLK, B_BLK, O_pad)   per-step outputs (output columns only)
    # hfin_ref: (B_BLK, H_pad)          final hidden (written once per b block)
    # h_scr:    (B_BLK, H_pad)          VMEM hidden carry across time blocks
    tb = pl.program_id(1)

    @pl.when(tb == 0)
    def _():
        h_scr[...] = h0_ref[...]

    # Hoisted loop invariants (weights, bias, tanh column mask).
    wx = wx_ref[...]
    wh = wh_ref[...]
    bias = b_ref[...]
    mxu_dtype = wx.dtype
    b_blk = x_ref.shape[1]
    n_pad = wx.shape[1]
    col = lax.broadcasted_iota(jnp.int32, (b_blk, n_pad), 1)
    hid_cols = col < hidden_size

    def step(t, h):
        pre = (jnp.dot(x_ref[t], wx, preferred_element_type=jnp.float32)
               + jnp.dot(h.astype(mxu_dtype), wh,
                         preferred_element_type=jnp.float32)
               + bias)
        # tanh only on the hidden columns; output columns stay linear.
        act = jnp.where(hid_cols, jnp.tanh(pre), pre)
        out_ref[t] = act[:, hidden_pad:].astype(out_ref.dtype)
        h_new = act[:, :hidden_pad]
        if mask_time:
            # Keep the carry valid on padded timesteps of the last time block.
            valid = tb * t_block + t < seq_len
            h_new = jnp.where(valid, h_new, h)
        return h_new

    h_final = lax.fori_loop(0, t_block, step, h_scr[...], unroll=True)
    h_scr[...] = h_final

    @pl.when(tb == pl.num_programs(1) - 1)
    def _():
        hfin_ref[...] = h_final


# ----------------------------------------------------------------------------
# Parameter fusing / padding (done once, outside the per-step path).
# ----------------------------------------------------------------------------
def fuse_and_pad_params(params, input_size, hidden_size, output_size,
                        weight_dtype=jnp.bfloat16):
    I, H, O = input_size, hidden_size, output_size
    I_pad = _round_up(max(I, _SUBLANE), _SUBLANE)
    H_pad = _round_up(H, _LANE)
    O_pad = _round_up(O, _LANE)
    N_pad = H_pad + O_pad

    w_i2h, w_i2o = params["w_i2h"], params["w_i2o"]        # (I+H, H), (I+H, O)

    wx = jnp.zeros((I_pad, N_pad), jnp.float32)
    wx = wx.at[:I, :H].set(w_i2h[:I])
    wx = wx.at[:I, H_pad:H_pad + O].set(w_i2o[:I])

    wh = jnp.zeros((H_pad, N_pad), jnp.float32)
    wh = wh.at[:H, :H].set(w_i2h[I:])
    wh = wh.at[:H, H_pad:H_pad + O].set(w_i2o[I:])

    b = jnp.zeros((1, N_pad), jnp.float32)
    b = b.at[:, :H].set(params["b_i2h"])
    b = b.at[:, H_pad:H_pad + O].set(params["b_i2o"])

    return {"wx": wx.astype(weight_dtype), "wh": wh.astype(weight_dtype),
            "b": b, "I": I, "H": H, "O": O,
            "I_pad": I_pad, "H_pad": H_pad, "O_pad": O_pad, "N_pad": N_pad}


# ----------------------------------------------------------------------------
# Padding of runtime inputs (do this once outside a training hot loop).
# ----------------------------------------------------------------------------
def pad_inputs(xs, h0, fused, *, t_block, b_block):
    T, B, I = xs.shape
    H = fused["H"]
    I_pad, H_pad = fused["I_pad"], fused["H_pad"]
    T_pad = _round_up(T, t_block)
    B_pad = _round_up(max(B, b_block), b_block)
    in_dtype = fused["wx"].dtype
    xs_pad = jnp.zeros((T_pad, B_pad, I_pad), in_dtype)
    xs_pad = xs_pad.at[:T, :B, :I].set(xs.astype(in_dtype))
    h0_pad = jnp.zeros((B_pad, H_pad), jnp.float32).at[:B, :H].set(h0)
    return xs_pad, h0_pad


# ----------------------------------------------------------------------------
# pallas_call wrapper
# ----------------------------------------------------------------------------
def _pallas_rnn(xs_pad, h0_pad, fused, *, t_block, b_block, seq_len, out_dtype):
    T_pad, B_pad, I_pad = xs_pad.shape
    H, H_pad, O_pad, N_pad = fused["H"], fused["H_pad"], fused["O_pad"], fused["N_pad"]
    num_b = B_pad // b_block
    num_t = T_pad // t_block

    # Explicit VMEM budget (double-buffered x/out blocks + resident weights).
    w_bytes = jnp.dtype(fused["wx"].dtype).itemsize
    x_bytes = jnp.dtype(xs_pad.dtype).itemsize
    o_bytes = jnp.dtype(out_dtype).itemsize
    vmem_est = (2 * t_block * b_block * I_pad * x_bytes
                + 2 * t_block * b_block * O_pad * o_bytes
                + 4 * b_block * H_pad * 4                 # h0 in + hfin out
                + 2 * (I_pad + H_pad) * N_pad * w_bytes   # wx + wh
                + 2 * _SUBLANE * N_pad * 4                # bias
                + b_block * H_pad * 4)                    # h_scr scratch
    vmem_limit = int(min(max(2 * vmem_est, 8 << 20), 64 << 20))

    kernel = functools.partial(
        _rnn_seq_kernel,
        hidden_size=H, hidden_pad=H_pad, t_block=t_block,
        seq_len=seq_len, mask_time=(T_pad != seq_len))

    out, hfin = pl.pallas_call(
        kernel,
        out_shape=(
            jax.ShapeDtypeStruct((T_pad, B_pad, O_pad), out_dtype),
            jax.ShapeDtypeStruct((B_pad, H_pad), jnp.float32),
        ),
        grid=(num_b, num_t),
        in_specs=[
            pl.BlockSpec((t_block, b_block, I_pad), lambda b, t: (t, b, 0)),  # x
            pl.BlockSpec((b_block, H_pad), lambda b, t: (b, 0)),              # h0
            pl.BlockSpec((I_pad, N_pad), lambda b, t: (0, 0)),                # Wx
            pl.BlockSpec((H_pad, N_pad), lambda b, t: (0, 0)),                # Wh
            pl.BlockSpec((1, N_pad), lambda b, t: (0, 0)),                    # bias
        ],
        out_specs=(
            pl.BlockSpec((t_block, b_block, O_pad), lambda b, t: (t, b, 0)),
            pl.BlockSpec((b_block, H_pad), lambda b, t: (b, 0)),
        ),
        scratch_shapes=[pltpu.VMEM((b_block, H_pad), jnp.float32)],
        compiler_params=pltpu.CompilerParams(
            dimension_semantics=("parallel", "arbitrary"),
            vmem_limit_bytes=vmem_limit),
    )(xs_pad, h0_pad, fused["wx"], fused["wh"], fused["b"])
    return out, hfin


def rnn_forward_seq(xs, h0, fused, *, t_block=None, out_dtype=jnp.float32):
    """xs: (T, B, I), h0: (B, H) -> (outputs (T, B, O), final hidden (B, H))."""
    T, B, _ = xs.shape
    H, O = fused["H"], fused["O"]
    if t_block is None:
        t_block = min(64, T)
    t_block = max(1, min(t_block, T))
    B_pad = _round_up(max(B, _SUBLANE), _SUBLANE)
    b_block = B_pad if B_pad <= 256 else 256
    # NOTE: for repeated calls (training loops), call pad_inputs once up front
    # and feed _pallas_rnn directly; padding here is per-call convenience only.
    xs_pad, h0_pad = pad_inputs(xs, h0, fused, t_block=t_block, b_block=b_block)
    out, hfin = _pallas_rnn(xs_pad, h0_pad, fused,
                            t_block=t_block, b_block=b_block,
                            seq_len=T, out_dtype=out_dtype)
    return out[:T, :B, :O].astype(jnp.float32), hfin[:B, :H]


def rnn_forward(input_tensor, hidden_tensor, fused):
    """Exact semantics of RNN.forward: (output, hidden) for one step."""
    outs, h_fin = rnn_forward_seq(input_tensor[None], hidden_tensor, fused,
                                  t_block=1)
    return outs[0], h_fin


# ----------------------------------------------------------------------------
# Init (mimics nn.Linear's uniform(-1/sqrt(fan_in), 1/sqrt(fan_in)))
# ----------------------------------------------------------------------------
def init_params(key, input_size, hidden_size, output_size):
    fan_in = input_size + hidden_size
    bound = 1.0 / math.sqrt(fan_in)
    k1, k2, k3, k4 = jax.random.split(key, 4)
    # Stored transposed: (fan_in, fan_out), so forward is comb @ W + b.
    w_i2h = jax.random.uniform(k1, (fan_in, hidden_size), jnp.float32,
                               minval=-bound, maxval=bound)
    b_i2h = jax.random.uniform(k2, (1, hidden_size), jnp.float32,
                               minval=-bound, maxval=bound)
    w_i2o = jax.random.uniform(k3, (fan_in, output_size), jnp.float32,
                               minval=-bound, maxval=bound)
    b_i2o = jax.random.uniform(k4, (1, output_size), jnp.float32,
                               minval=-bound, maxval=bound)
    return {"w_i2h": w_i2h, "b_i2h": b_i2h, "w_i2o": w_i2o, "b_i2o": b_i2o}


def _ref_step(x, h, params):
    comb = jnp.concatenate([x, h], axis=1)
    hidden = jnp.tanh(comb @ params["w_i2h"] + params["b_i2h"])
    output = comb @ params["w_i2o"] + params["b_i2o"]
    return output, hidden


if __name__ == "__main__":
    input_size, hidden_size, output_size = 16, 32, 8
    batch, seq_len = 2, 6

    key = jax.random.PRNGKey(0)
    k_params, k_x = jax.random.split(key, 2)

    params = init_params(k_params, input_size, hidden_size, output_size)
    fused = fuse_and_pad_params(params, input_size, hidden_size, output_size)

    xs = jax.random.normal(k_x, (seq_len, batch, input_size), jnp.float32)
    h0 = jnp.zeros((batch, hidden_size), jnp.float32)  # like init_hidden()

    # bf16 MXU inputs -> compare against the f32 reference with relaxed tols.
    tol = dict(atol=3e-2, rtol=3e-2)

    # --- single-step call: exact module semantics forward(input, hidden) ---
    out1, hid1 = rnn_forward(xs[0], h0, fused)
    jax.block_until_ready((out1, hid1))
    ref_out1, ref_hid1 = _ref_step(xs[0], h0, params)
    assert out1.shape == (batch, output_size)
    assert hid1.shape == (batch, hidden_size)
    assert jnp.allclose(out1, ref_out1, **tol)
    assert jnp.allclose(hid1, ref_hid1, **tol)

    # --- whole sequence in one pallas_call; t_block=4 does not divide T=6,
    #     exercising the padded-timestep mask on the last time block. ---
    outs, h_fin = rnn_forward_seq(xs, h0, fused, t_block=4)
    jax.block_until_ready((outs, h_fin))

    h = h0
    for t in range(seq_len):
        ref_o, h = _ref_step(xs[t], h, params)
        assert jnp.allclose(outs[t], ref_o, **tol), f"output mismatch at t={t}"
    assert jnp.allclose(h_fin, h, **tol), "final hidden mismatch"

    print("KERNEL_OK")
</pallas_src>

<mosaic_0001>
module attributes {stable_mosaic.version = 11 : i64} {
  func.func @_rnn_seq_kernel(%arg0: i32, %arg1: i32, %arg2: memref<1x8x16xbf16, #tpu.memory_space<vmem>>, %arg3: memref<8x128xf32, #tpu.memory_space<vmem>>, %arg4: memref<16x256xbf16, #tpu.memory_space<vmem>>, %arg5: memref<128x256xbf16, #tpu.memory_space<vmem>>, %arg6: memref<1x256xf32, #tpu.memory_space<vmem>>, %arg7: memref<1x8x128xf32, #tpu.memory_space<vmem>>, %arg8: memref<8x128xf32, #tpu.memory_space<vmem>>, %arg9: memref<8x128xf32, #tpu.memory_space<vmem>>) attributes {dimension_semantics = [#tpu.dimension_semantics<parallel>, #tpu.dimension_semantics<arbitrary>], iteration_bounds = array<i64: 1, 1>, scalar_prefetch = 0 : i64, scratch_operands = 1 : i64, tpu.core_type = #tpu.core_type<tc>, window_params = [{transform_indices = @transform_0, window_bounds = array<i64: 1, 8, 16>}, {transform_indices = @transform_1, window_bounds = array<i64: 8, 128>}, {pipeline_mode = #tpu.pipeline_mode<synchronous>, transform_indices = @transform_2, window_bounds = array<i64: 16, 256>}, {pipeline_mode = #tpu.pipeline_mode<synchronous>, transform_indices = @transform_3, window_bounds = array<i64: 128, 256>}, {pipeline_mode = #tpu.pipeline_mode<synchronous>, transform_indices = @transform_4, window_bounds = array<i64: 1, 256>}, {transform_indices = @transform_5, window_bounds = array<i64: 1, 8, 128>}, {transform_indices = @transform_6, window_bounds = array<i64: 8, 128>}]} {
    %c0_i32 = arith.constant 0 : i32
    %0 = arith.cmpi eq, %arg1, %c0_i32 : i32
    %1 = arith.extui %0 : i1 to i32
    %c0_i32_0 = arith.constant 0 : i32
    %2 = arith.cmpi ne, %1, %c0_i32_0 : i32
    scf.if %2 {
      %c0_18 = arith.constant 0 : index
      %c0_19 = arith.constant 0 : index
      %31 = vector.load %arg3[%c0_18, %c0_19] : memref<8x128xf32, #tpu.memory_space<vmem>>, vector<8x128xf32>
      %c0_20 = arith.constant 0 : index
      %c0_21 = arith.constant 0 : index
      %32 = vector.load %arg9[%c0_20, %c0_21] : memref<8x128xf32, #tpu.memory_space<vmem>>, vector<8x128xf32>
      tpu.vector_store %arg9[%c0_20, %c0_21], %31 {strides = array<i32>} : memref<8x128xf32, #tpu.memory_space<vmem>>, vector<8x128xf32>,
    } else {
    }
    %c0 = arith.constant 0 : index
    %c0_1 = arith.constant 0 : index
    %3 = vector.load %arg4[%c0, %c0_1] : memref<16x256xbf16, #tpu.memory_space<vmem>>, vector<16x256xbf16>
    %c0_2 = arith.constant 0 : index
    %c0_3 = arith.constant 0 : index
    %4 = vector.load %arg5[%c0_2, %c0_3] : memref<128x256xbf16, #tpu.memory_space<vmem>>, vector<128x256xbf16>
    %c0_4 = arith.constant 0 : index
    %c0_5 = arith.constant 0 : index
    %5 = vector.load %arg6[%c0_4, %c0_5] : memref<1x256xf32, #tpu.memory_space<vmem>>, vector<1x256xf32>
    %6 = tpu.iota {dimensions = array<i32: 1>} : vector<8x256xi32>
    %c32_i32 = arith.constant 32 : i32
    %7 = vector.broadcast %c32_i32 : i32 to vector<8x256xi32>
    %8 = arith.cmpi slt, %6, %7 : vector<8x256xi32>
    %c0_6 = arith.constant 0 : index
    %c0_7 = arith.constant 0 : index
    %9 = vector.load %arg9[%c0_6, %c0_7] : memref<8x128xf32, #tpu.memory_space<vmem>>, vector<8x128xf32>
    %c0_i32_8 = arith.constant 0 : i32
    %10 = arith.index_cast %c0_i32_8 : i32 to index
    %c0_9 = arith.constant 0 : index
    %c0_10 = arith.constant 0 : index
    %11 = vector.load %arg2[%10, %c0_9, %c0_10] : memref<1x8x16xbf16, #tpu.memory_space<vmem>>, vector<1x8x16xbf16>
    %12 = vector.shape_cast %11 : vector<1x8x16xbf16> to vector<8x16xbf16>
    %cst = arith.constant dense<0.000000e+00> : vector<8x256xf32>
    %13 = tpu.matmul %12, %3, %cst {dimension_numbers = #tpu.dot_dimension_numbers<[1], [0], [0], [1], [0, 0, 1, 1], [], []>} : vector<8x16xbf16>, vector<16x256xbf16>, vector<8x256xf32> -> vector<8x256xf32>
    %14 = arith.truncf %9 : vector<8x128xf32> to vector<8x128xbf16>
    %cst_11 = arith.constant dense<0.000000e+00> : vector<8x256xf32>
    %15 = tpu.matmul %14, %4, %cst_11 {dimension_numbers = #tpu.dot_dimension_numbers<[1], [0], [0], [1], [0, 0, 1, 1], [], []>} : vector<8x128xbf16>, vector<128x256xbf16>, vector<8x256xf32> -> vector<8x256xf32>
    %16 = arith.addf %13, %15 : vector<8x256xf32>
    %17 = vector.broadcast %5 : vector<1x256xf32> to vector<8x256xf32>
    %18 = arith.addf %16, %17 : vector<8x256xf32>
    %19 = math.tanh %18 : vector<8x256xf32>
    %20 = arith.select %8, %19, %18 : vector<8x256xi1>, vector<8x256xf32>
    %21 = vector.extract_strided_slice %20 {offsets = [0, 128], sizes = [8, 128], strides = [1, 1]} : vector<8x256xf32> to vector<8x128xf32>
    %22 = arith.index_cast %c0_i32_8 : i32 to index
    %c0_12 = arith.constant 0 : index
    %c0_13 = arith.constant 0 : index
    %23 = vector.load %arg7[%22, %c0_12, %c0_13] : memref<1x8x128xf32, #tpu.memory_space<vmem>>, vector<1x8x128xf32>
    %24 = vector.shape_cast %23 : vector<1x8x128xf32> to vector<8x128xf32>
    %25 = vector.shape_cast %21 : vector<8x128xf32> to vector<1x8x128xf32>
    tpu.vector_store %arg7[%22, %c0_12, %c0_13], %25 {strides = array<i32>} : memref<1x8x128xf32, #tpu.memory_space<vmem>>, vector<1x8x128xf32>,
    %26 = vector.extract_strided_slice %20 {offsets = [0, 0], sizes = [8, 128], strides = [1, 1]} : vector<8x256xf32> to vector<8x128xf32>
    %c1_i32 = arith.constant 1 : i32
    %c0_14 = arith.constant 0 : index
    %c0_15 = arith.constant 0 : index
    %27 = vector.load %arg9[%c0_14, %c0_15] : memref<8x128xf32, #tpu.memory_space<vmem>>, vector<8x128xf32>
    tpu.vector_store %arg9[%c0_14, %c0_15], %26 {strides = array<i32>} : memref<8x128xf32, #tpu.memory_space<vmem>>, vector<8x128xf32>,
    %c0_i32_16 = arith.constant 0 : i32
    %28 = arith.cmpi eq, %arg1, %c0_i32_16 : i32
    %29 = arith.extui %28 : i1 to i32
    %c0_i32_17 = arith.constant 0 : i32
    %30 = arith.cmpi ne, %29, %c0_i32_17 : i32
    scf.if %30 {
      %c0_18 = arith.constant 0 : index
      %c0_19 = arith.constant 0 : index
      %31 = vector.load %arg8[%c0_18, %c0_19] : memref<8x128xf32, #tpu.memory_space<vmem>>, vector<8x128xf32>
      tpu.vector_store %arg8[%c0_18, %c0_19], %26 {strides = array<i32>} : memref<8x128xf32, #tpu.memory_space<vmem>>, vector<8x128xf32>,
    } else {
    }
    return
  }
  func.func @transform_0(%arg0: i32, %arg1: i32) -> (i32, i32, i32) {
    %c0_i32 = arith.constant 0 : i32
    %c0_i32_0 = arith.constant 0 : i32
    return %arg1, %arg0, %c0_i32 : i32, i32, i32
  }
  func.func @transform_1(%arg0: i32, %arg1: i32) -> (i32, i32) {
    %c0_i32 = arith.constant 0 : i32
    %c0_i32_0 = arith.constant 0 : i32
    return %arg0, %c0_i32 : i32, i32
  }
  func.func @transform_2(%arg0: i32, %arg1: i32) -> (i32, i32) {
    %c0_i32 = arith.constant 0 : i32
    %c0_i32_0 = arith.constant 0 : i32
    %c0_i32_1 = arith.constant 0 : i32
    return %c0_i32, %c0_i32_0 : i32, i32
  }
  func.func @transform_3(%arg0: i32, %arg1: i32) -> (i32, i32) {
    %c0_i32 = arith.constant 0 : i32
    %c0_i32_0 = arith.constant 0 : i32
    %c0_i32_1 = arith.constant 0 : i32
    return %c0_i32, %c0_i32_0 : i32, i32
  }
  func.func @transform_4(%arg0: i32, %arg1: i32) -> (i32, i32) {
    %c0_i32 = arith.constant 0 : i32
    %c0_i32_0 = arith.constant 0 : i32
    %c0_i32_1 = arith.constant 0 : i32
    return %c0_i32, %c0_i32_0 : i32, i32
  }
  func.func @transform_5(%arg0: i32, %arg1: i32) -> (i32, i32, i32) {
    %c0_i32 = arith.constant 0 : i32
    %c0_i32_0 = arith.constant 0 : i32
    return %arg1, %arg0, %c0_i32 : i32, i32, i32
  }
  func.func @transform_6(%arg0: i32, %arg1: i32) -> (i32, i32) {
    %c0_i32 = arith.constant 0 : i32
    %c0_i32_0 = arith.constant 0 : i32
    return %arg0, %c0_i32 : i32, i32
  }
}

</mosaic_0001>

<llo_original>
// kernel: tpu_custom_call.1
$region0: #{tpu_custom_call.1}
  #allocation0 [shape = 'u32[]', space=smem, size = 0x4, offset = 0x4, fixed_abs, tag = 'smem constant byte address 0x4 - core index']
  #allocation1 [shape = 'u32[144,128]{1,0:T(1,128)}', space=vmem, size = 0x12000, scoped, tag = 'internal scratch']
  #allocation2 [shape = 'f32[8,128]{1,0:T(8,128)}', space=vmem, size = 0x1000, scoped, tag = 'scratch operand']
  %s0 = inlined_call_operand.hbm [shape: bf16[1,8,16], index: 0, kind: input, shape index: {}]
  %s1 = inlined_call_operand.hbm [shape: f32[8,128], index: 1, kind: input, shape index: {}]
  %s2 = inlined_call_operand.hbm [shape: bf16[16,256], index: 2, kind: input, shape index: {}]
  %s3 = inlined_call_operand.hbm [shape: bf16[128,256], index: 3, kind: input, shape index: {}]
  %s4 = inlined_call_operand.vmem [shape: f32[1,256], index: 4, kind: input, shape index: {}]
  %s5 = inlined_call_operand.hbm [shape: f32[1,8,128], index: 5, kind: output, shape index: {0}]
  %s6 = inlined_call_operand.hbm [shape: f32[8,128], index: 6, kind: output, shape index: {1}]
  %7 = xla_tuple %s5, %s6
  %s8 = sld [smem:[#allocation0]]
  $region62: #{tpu_custom_call.1} parent=0
    _
  %s10 = ssub.s32 1, %s8
  %s11 = scalar_select 0, %s10, %s8
  $region1: #{tpu_custom_call.1} parent=0
    #allocation3 [shape = 'u8[2048]{0}', space=vmem, size = 0x800, scoped, tag = 'input window, operand 0, single buffered']
    #allocation4 [shape = 's32[1]{0}', space=sflag, size = 0x4, scoped, tag = 'scoped memory for tpu_custom_call.1']
    #allocation5 [shape = 's32[1]{0}', space=sflag, size = 0x4, scoped, tag = 'scoped memory for tpu_custom_call.1']
    #allocation6 [shape = 'u8[4096]{0}', space=vmem, size = 0x1000, scoped, tag = 'input window, operand 1, single buffered']
    #allocation7 [shape = 's32[1]{0}', space=sflag, size = 0x4, scoped, tag = 'scoped memory for tpu_custom_call.1']
    #allocation8 [shape = 'u8[8192]{0}', space=vmem, size = 0x2000, scoped, tag = 'input window, operand 2, single buffered']
    #allocation9 [shape = 'u8[65536]{0}', space=vmem, size = 0x10000, scoped, tag = 'input window, operand 3, single buffered']
    #allocation10 [shape = 's32[1]{0}', space=sflag, size = 0x4, scoped, tag = 'scoped memory for tpu_custom_call.1']
    #allocation11 [shape = 'u8[4096]{0}', space=vmem, size = 0x1000, scoped, tag = 'output window, operand 0, single buffered']
    #allocation12 [shape = 'u8[4096]{0}', space=vmem, size = 0x1000, scoped, tag = 'output window, operand 1, single buffered']
    #allocation13 [shape = 's32[1]{0}', space=sflag, size = 0x4, scoped, tag = 'scoped memory for tpu_custom_call.1']
    %12 = vsyncpa [#allocation4], 0
    %13 = vsyncpa [#allocation7], 0
    %14 = vsyncpa [#allocation10], 0
    %15 = vsyncpa [#allocation5], 0
    %16 = vsyncpa [#allocation13], 0
    // Predicated region
    $region2: #{tpu_custom_call.1} parent=1 // pred_check
      _
    $region3: #{tpu_custom_call.1} parent=1 // pred_check_branch
      %18 = sbr.rel (0) target = $region5
    $region4: #{tpu_custom_call.1} parent=1 // pred_region
      %s20 = ssub.s32 64, 64
      %21 = vsyncadd [#allocation4], %s20
      %s23 = sshll.u32 [#allocation3], 4
      %s24 = int_to_ptr.vmem [resolvable:$true] %s23
      %26 = dma.hbm_to_vmem [thread:$0]  %s0, 64, %s24, [#allocation4]
    $region5: #{tpu_custom_call.1} parent=1 // pred_fallthru
      _
    // Predicated region
    $region6: #{tpu_custom_call.1} parent=1 // pred_check
      _
    $region7: #{tpu_custom_call.1} parent=1 // pred_check_branch
      %28 = sbr.rel (0) target = $region9
    $region8: #{tpu_custom_call.1} parent=1 // pred_region
      %s30 = ssub.s32 128, 128
      %31 = vsyncadd [#allocation7], %s30
      %s33 = sshll.u32 [#allocation6], 4
      %s34 = int_to_ptr.vmem [resolvable:$true] %s33
      %36 = dma.hbm_to_vmem [thread:$0]  %s1, 128, %s34, [#allocation7]
    $region9: #{tpu_custom_call.1} parent=1 // pred_fallthru
      _
    // Predicated region
    $region10: #{tpu_custom_call.1} parent=1 // pred_check
      _
    $region11: #{tpu_custom_call.1} parent=1 // pred_check_branch
      %38 = sbr.rel (0) target = $region13
    $region12: #{tpu_custom_call.1} parent=1 // pred_region
      %s40 = ssub.s32 256, 256
      %41 = vsyncadd [#allocation7], %s40
      %s42 = sshll.u32 [#allocation8], 4
      %s43 = int_to_ptr.vmem [resolvable:$true] %s42
      %48 = dma.hbm_to_vmem [thread:$0]  %s2, 256, %s43, [#allocation7], 128, 128, 8
    $region13: #{tpu_custom_call.1} parent=1 // pred_fallthru
      _
    // Predicated region
    $region14: #{tpu_custom_call.1} parent=1 // pred_check
      _
    $region15: #{tpu_custom_call.1} parent=1 // pred_check_branch
      %50 = sbr.rel (0) target = $region17
    $region16: #{tpu_custom_call.1} parent=1 // pred_region
      %s52 = ssub.s32 2048, 2048
      %53 = vsyncadd [#allocation10], %s52
      %s54 = sshll.u32 [#allocation9], 4
      %s55 = int_to_ptr.vmem [resolvable:$true] %s54
      %60 = dma.hbm_to_vmem [thread:$0]  %s3, 2048, %s55, [#allocation10], 128, 128, 8
    $region17: #{tpu_custom_call.1} parent=1 // pred_fallthru
      _
    // Predicated region
    $region18: #{tpu_custom_call.1} parent=1 // pred_check
      _
    $region19: #{tpu_custom_call.1} parent=1 // pred_check_branch
      %62 = sbr.rel (0) target = $region21
    $region20: #{tpu_custom_call.1} parent=1 // pred_region
      _
    $region21: #{tpu_custom_call.1} parent=1 // pred_fallthru
      _
    // Predicated region
    $region22: #{tpu_custom_call.1} parent=1 // pred_check
      _
    $region23: #{tpu_custom_call.1} parent=1 // pred_check_branch
      %64 = sbr.rel (0) target = $region25
    $region24: #{tpu_custom_call.1} parent=1 // pred_region
      %65 = dma.done [#allocation4], 64
    $region25: #{tpu_custom_call.1} parent=1 // pred_fallthru
      _
    // Predicated region
    $region26: #{tpu_custom_call.1} parent=1 // pred_check
      _
    $region27: #{tpu_custom_call.1} parent=1 // pred_check_branch
      %67 = sbr.rel (0) target = $region29
    $region28: #{tpu_custom_call.1} parent=1 // pred_region
      %68 = dma.done [#allocation7], 128
    $region29: #{tpu_custom_call.1} parent=1 // pred_fallthru
      _
    // Predicated region
    $region30: #{tpu_custom_call.1} parent=1 // pred_check
      _
    $region31: #{tpu_custom_call.1} parent=1 // pred_check_branch
      %70 = sbr.rel (0) target = $region33
    $region32: #{tpu_custom_call.1} parent=1 // pred_region
      %71 = dma.done [#allocation7], 256
    $region33: #{tpu_custom_call.1} parent=1 // pred_fallthru
      _
    // Predicated region
    $region34: #{tpu_custom_call.1} parent=1 // pred_check
      _
    $region35: #{tpu_custom_call.1} parent=1 // pred_check_branch
      %73 = sbr.rel (0) target = $region37
    $region36: #{tpu_custom_call.1} parent=1 // pred_region
      %74 = dma.done [#allocation10], 2048
    $region37: #{tpu_custom_call.1} parent=1 // pred_fallthru
      _
    %p76 = scmp.eq.s32.totalorder 0, 0
    // Predicated region
    $region38: #{tpu_custom_call.1} parent=1 // pred_check
      %p77 = pneg %p76
    $region39: #{tpu_custom_call.1} parent=1 // pred_check_branch
      %79 = sbr.rel (%p77) target = $region41
    $region40: #{tpu_custom_call.1} parent=1 // pred_region
      %v80 = vld [vmem:[#allocation6] sm:$0xff]
      %81 = vst [vmem:[#allocation2] sm:$0xff] %v80
    $region41: #{tpu_custom_call.1} parent=1 // pred_fallthru
      _
    %v82 = vld [vmem:[#allocation8] sm:$0xff]
    %v83 = vld [vmem:[#allocation8 + $0x8] sm:$0xff]
    %v84 = vld [vmem:[#allocation9] sm:$0xff]
    %v85 = vld [vmem:[#allocation9 + $0x8] sm:$0xff]
    %v86 = vld [vmem:[#allocation9 + $0x10] sm:$0xff]
    %v87 = vld [vmem:[#allocation9 + $0x18] sm:$0xff]
    %v88 = vld [vmem:[#allocation9 + $0x20] sm:$0xff]
    %v89 = vld [vmem:[#allocation9 + $0x28] sm:$0xff]
    %v90 = vld [vmem:[#allocation9 + $0x30] sm:$0xff]
    %v91 = vld [vmem:[#allocation9 + $0x38] sm:$0xff]
    %v92 = vld [vmem:[#allocation9 + $0x40] sm:$0xff]
    %v93 = vld [vmem:[#allocation9 + $0x48] sm:$0xff]
    %v94 = vld [vmem:[#allocation9 + $0x50] sm:$0xff]
    %v95 = vld [vmem:[#allocation9 + $0x58] sm:$0xff]
    %v96 = vld [vmem:[#allocation9 + $0x60] sm:$0xff]
    %v97 = vld [vmem:[#allocation9 + $0x68] sm:$0xff]
    %v98 = vld [vmem:[#allocation9 + $0x70] sm:$0xff]
    %v99 = vld [vmem:[#allocation9 + $0x78] sm:$0xff]
    %v100 = vld [vmem:[%s4] sm:$0x3]
    %v101 = vlaneseq
    %v102 = vand.u32 %v101, 127
    %v103 = vadd.s32 %v102, 128
    %vm104 = vcmp.lt.s32.totalorder %v102, 32
    %vm105 = vcmp.lt.s32.totalorder %v103, 32
    %v106 = vld [vmem:[#allocation2] sm:$0xff]
    %v107 = vld [vmem:[#allocation3] sm:$0xf]
    %v108 = vpack.c.bf16 %v106, %v106
    %v125 = vunpack.c.l.b16 %v84
    %v126 = vunpack.c.h.b16 %v84
    %v127 = vunpack.c.l.b16 %v85
    %v128 = vunpack.c.h.b16 %v85
    %v129 = vunpack.c.l.b16 %v86
    %v130 = vunpack.c.h.b16 %v86
    %v131 = vunpack.c.l.b16 %v87
    %v132 = vunpack.c.h.b16 %v87
    %v133 = vunpack.c.l.b16 %v88
    %v134 = vunpack.c.h.b16 %v88
    %v135 = vunpack.c.l.b16 %v89
    %v136 = vunpack.c.h.b16 %v89
    %v137 = vunpack.c.l.b16 %v90
    %v138 = vunpack.c.h.b16 %v90
    %v139 = vunpack.c.l.b16 %v91
    %v140 = vunpack.c.h.b16 %v91
    %v141 = vunpack.c.l.b16 %v92
    %v142 = vunpack.c.h.b16 %v92
    %v143 = vunpack.c.l.b16 %v93
    %v144 = vunpack.c.h.b16 %v93
    %v145 = vunpack.c.l.b16 %v94
    %v146 = vunpack.c.h.b16 %v94
    %v147 = vunpack.c.l.b16 %v95
    %v148 = vunpack.c.h.b16 %v95
    %v149 = vunpack.c.l.b16 %v96
    %v150 = vunpack.c.h.b16 %v96
    %v151 = vunpack.c.l.b16 %v97
    %v152 = vunpack.c.h.b16 %v97
    %v153 = vunpack.c.l.b16 %v98
    %v154 = vunpack.c.h.b16 %v98
    %v155 = vunpack.c.l.b16 %v99
    %v156 = vunpack.c.h.b16 %v99
    %v157 = vpack.c.b16 %v127, %v125
    %v158 = vpack.c.b16 %v128, %v126
    %v159 = vpack.c.b16 %v131, %v129
    %v160 = vpack.c.b16 %v132, %v130
    %v161 = vpack.c.b16 %v135, %v133
    %v162 = vpack.c.b16 %v136, %v134
    %v163 = vpack.c.b16 %v139, %v137
    %v164 = vpack.c.b16 %v140, %v138
    %v165 = vpack.c.b16 %v143, %v141
    %v166 = vpack.c.b16 %v144, %v142
    %v167 = vpack.c.b16 %v147, %v145
    %v168 = vpack.c.b16 %v148, %v146
    %v169 = vpack.c.b16 %v151, %v149
    %v170 = vpack.c.b16 %v152, %v150
    %v171 = vpack.c.b16 %v155, %v153
    %v172 = vpack.c.b16 %v156, %v154
    %189 = vmatprep.subr.bf16.mxu0 %v172
    %190 = vmatpush1.bf16.msra.mxu0 %v171
    %191 = vmatprep.subr.bf16.mxu0 %v170
    %192 = vmatpush1.bf16.msra.mxu0 %v169
    %193 = vmatprep.subr.bf16.mxu0 %v168
    %194 = vmatpush1.bf16.msra.mxu0 %v167
    %195 = vmatprep.subr.bf16.mxu0 %v166
    %196 = vmatpush1.bf16.msra.mxu0 %v165
    %197 = vmatprep.subr.bf16.mxu0 %v164
    %198 = vmatpush1.bf16.msra.mxu0 %v163
    %199 = vmatprep.subr.bf16.mxu0 %v162
    %200 = vmatpush1.bf16.msra.mxu0 %v161
    %201 = vmatprep.subr.bf16.mxu0 %v160
    %202 = vmatpush1.bf16.msra.mxu0 %v159
    %203 = vmatprep.subr.bf16.mxu0 %v158
    %204 = vmatpush1.bf16.msra.mxu0 %v157
    %205 = vmatprep.subr.bf16.mxu0 0
    %206 = vmatpush2.bf16.msra.mxu0 0
    %207 = vmatprep.subr.bf16.mxu0 0
    %208 = vmatpush2.bf16.msra.mxu0 0
    %209 = vmatprep.subr.bf16.mxu0 0
    %210 = vmatpush2.bf16.msra.mxu0 0
    %211 = vmatprep.subr.bf16.mxu0 0
    %212 = vmatpush2.bf16.msra.mxu0 0
    %213 = vmatprep.subr.bf16.mxu0 0
    %214 = vmatpush2.bf16.msra.mxu0 0
    %215 = vmatprep.subr.bf16.mxu0 0
    %216 = vmatpush2.bf16.msra.mxu0 0
    %217 = vmatprep.subr.bf16.mxu0 0
    %218 = vmatpush2.bf16.msra.mxu0 0
    %219 = vmatprep.subr.bf16.mxu0 0
    %220 = vmatpush2.bf16.msra.mxu0 0
    %221 = vmatprep.mubr.bf16.mxu0 0
    %222 = vmatmul.mubr.bf16.gmra.mxu0 %v108
    %v223 = vpop.f32.mrf.mxu0
    %v224 = vadd.f32 0.0, %v223
    %v225 = vpop.f32.mrf.mxu0
    %v226 = vadd.f32 0.0, %v225
    %v227 = vpop.f32.mrf.mxu0
    %v228 = vpop.f32.mrf.mxu0
    %229 = vdwg.mxu0
    %v232 = vunpack.c.l.b16 %v82
    %v233 = vunpack.c.h.b16 %v82
    %v234 = vunpack.c.l.b16 %v83
    %v235 = vunpack.c.h.b16 %v83
    %v236 = vpack.c.b16 %v234, %v232
    %v237 = vpack.c.b16 %v235, %v233
    %vm240 = vcmask 130048
    %v242 = vsel %vm240, %v107, 0
    %244 = vmatprep.subr.bf16.mxu0 0
    %245 = vmatpush1.bf16.msra.mxu0 0
    %246 = vmatprep.subr.bf16.mxu0 0
    %247 = vmatpush1.bf16.msra.mxu0 0
    %248 = vmatprep.subr.bf16.mxu0 0
    %249 = vmatpush1.bf16.msra.mxu0 0
    %250 = vmatprep.subr.bf16.mxu0 0
    %251 = vmatpush1.bf16.msra.mxu0 0
    %252 = vmatprep.subr.bf16.mxu0 0
    %253 = vmatpush1.bf16.msra.mxu0 0
    %254 = vmatprep.subr.bf16.mxu0 0
    %255 = vmatpush1.bf16.msra.mxu0 0
    %256 = vmatprep.subr.bf16.mxu0 0
    %257 = vmatpush1.bf16.msra.mxu0 0
    %258 = vmatprep.subr.bf16.mxu0 %v237
    %259 = vmatpush1.bf16.msra.mxu0 %v236
    %260 = vmatprep.subr.bf16.mxu0 0
    %261 = vmatpush2.bf16.msra.mxu0 0
    %262 = vmatprep.subr.bf16.mxu0 0
    %263 = vmatpush2.bf16.msra.mxu0 0
    %264 = vmatprep.subr.bf16.mxu0 0
    %265 = vmatpush2.bf16.msra.mxu0 0
    %266 = vmatprep.subr.bf16.mxu0 0
    %267 = vmatpush2.bf16.msra.mxu0 0
    %268 = vmatprep.subr.bf16.mxu0 0
    %269 = vmatpush2.bf16.msra.mxu0 0
    %270 = vmatprep.subr.bf16.mxu0 0
    %271 = vmatpush2.bf16.msra.mxu0 0
    %272 = vmatprep.subr.bf16.mxu0 0
    %273 = vmatpush2.bf16.msra.mxu0 0
    %274 = vmatprep.subr.bf16.mxu0 0
    %275 = vmatpush2.bf16.msra.mxu0 0
    %276 = vmatprep.mubr.bf16.mxu0 0
    %277 = vmatmul.mubr.bf16.gmra.mxu0 %v242
    %v278 = vpop.f32.mrf.mxu0
    %v279 = vadd.f32 %v224, %v278
    %v280 = vpop.f32.mrf.mxu0
    %v281 = vadd.f32 %v226, %v280
    %v282 = vpop.f32.mrf.mxu0
    %v283 = vpop.f32.mrf.mxu0
    %284 = vdwg.mxu0
    %v286 = vlaneseq
    %v287 = vshrl.u32 %v286, 7
    %v288 = vsub.s32 0, %v287
    %v289 = vrot.slane %v100, %v288
    %v290 = vlaneseq
    %v291 = vshrl.u32 %v290, 7
    %v292 = vsub.s32 1, %v291
    %v293 = vrot.slane %v100, %v292
    %v296 = vadd.f32 %v279, %v289
    %v297 = vadd.f32 %v281, %v293
    %v298 = vtanh.pop %v296
    %v299 = vtanh.pop %v297
    %v300 = vsel %vm104, %v298, %v296
    %v301 = vsel %vm105, %v299, %v297
    %302 = vst [vmem:[#allocation11] sm:$0xff] %v301
    %303 = vst [vmem:[#allocation2] sm:$0xff] %v300
    // Predicated region
    $region42: #{tpu_custom_call.1} parent=1 // pred_check
      %p304 = pneg %p76
    $region43: #{tpu_custom_call.1} parent=1 // pred_check_branch
      %306 = sbr.rel (%p304) target = $region45
    $region44: #{tpu_custom_call.1} parent=1 // pred_region
      %307 = vst [vmem:[#allocation12] sm:$0xff] %v300
    $region45: #{tpu_custom_call.1} parent=1 // pred_fallthru
      _
    // Predicated region
    $region46: #{tpu_custom_call.1} parent=1 // pred_check
      _
    $region47: #{tpu_custom_call.1} parent=1 // pred_check_branch
      %309 = sbr.rel (0) target = $region49
    $region48: #{tpu_custom_call.1} parent=1 // pred_region
      %s311 = ssub.s32 128, 128
      %312 = vsyncadd [#allocation5], %s311
      %s314 = sshll.u32 [#allocation11], 4
      %s315 = int_to_ptr.vmem [resolvable:$true] %s314
      %317 = dma.vmem_to_hbm [thread:$0]  %s315, 128, %s5, [#allocation5]
    $region49: #{tpu_custom_call.1} parent=1 // pred_fallthru
      _
    // Predicated region
    $region50: #{tpu_custom_call.1} parent=1 // pred_check
      _
    $region51: #{tpu_custom_call.1} parent=1 // pred_check_branch
      %319 = sbr.rel (0) target = $region53
    $region52: #{tpu_custom_call.1} parent=1 // pred_region
      %s321 = ssub.s32 128, 128
      %322 = vsyncadd [#allocation13], %s321
      %s324 = sshll.u32 [#allocation12], 4
      %s325 = int_to_ptr.vmem [resolvable:$true] %s324
      %327 = dma.vmem_to_hbm [thread:$0]  %s325, 128, %s6, [#allocation13]
    $region53: #{tpu_custom_call.1} parent=1 // pred_fallthru
      _
    // Predicated region
    $region54: #{tpu_custom_call.1} parent=1 // pred_check
      _
    $region55: #{tpu_custom_call.1} parent=1 // pred_check_branch
      %329 = sbr.rel (0) target = $region57
    $region56: #{tpu_custom_call.1} parent=1 // pred_region
      %330 = dma.done [#allocation5], 128
    $region57: #{tpu_custom_call.1} parent=1 // pred_fallthru
      _
    // Predicated region
    $region58: #{tpu_custom_call.1} parent=1 // pred_check
      _
    $region59: #{tpu_custom_call.1} parent=1 // pred_check_branch
      %332 = sbr.rel (0) target = $region61
    $region60: #{tpu_custom_call.1} parent=1 // pred_region
      %333 = dma.done [#allocation13], 128
    $region61: #{tpu_custom_call.1} parent=1 // pred_fallthru
      _
    %334 = vsyncpa [#allocation4], 1
    %335 = vsyncpa [#allocation7], 1
    %336 = vsyncpa [#allocation10], 1
    %337 = vsyncpa [#allocation5], 1
    %338 = vsyncpa [#allocation13], 1

</llo_original>
